<compile_context>
chip_gen: v6e
topology: v6e:2x2x1
jax: 0.10.0
libtpu: 0.0.40
codegen_flags: <defaults>
</compile_context>

<pallas_src>
import jax
import jax.numpy as jnp
from jax import lax
from jax.experimental import pallas as pl
from jax.experimental.pallas import tpu as pltpu


# ------------------------------ fused kernel ------------------------------- #

def _make_fused_kernel(TB, L, L2, L4):
    """Builds the fused CNN1D kernel for a batch tile of TB samples."""
    M1, M2 = TB * L, TB * L2

    def kernel(x_ref, w1_ref, b1_ref, w2_ref, b2_ref,
               wf1_ref, bf1_ref, wf2_ref, bf2_ref,
               o_ref, h1_ref, h2_ref):
        f32 = jnp.float32

        # ---- stage 1: conv1 (Cin=1, Cout=32, k=3, pad=1) + relu  (VPU FMAs) ----
        x0 = x_ref[...]                                           # (M1, 1)
        row1 = lax.broadcasted_iota(jnp.int32, (M1, 1), 0)
        first1 = (row1 % L) == 0
        last1 = (row1 % L) == (L - 1)
        zrow1 = jnp.zeros((1, 1), x0.dtype)
        xm1 = jnp.where(first1, 0.0,
                        jnp.concatenate([zrow1, x0[:-1, :]], axis=0))  # x[l-1]
        xp1 = jnp.where(last1, 0.0,
                        jnp.concatenate([x0[1:, :], zrow1], axis=0))   # x[l+1]
        w1 = w1_ref[...]                                          # (3, C1) taps
        h1 = jnp.maximum(
            xm1 * w1[0:1, :] + x0 * w1[1:2, :] + xp1 * w1[2:3, :] + b1_ref[...],
            0.0)                                                  # (M1, C1)
        h1_ref[...] = h1

        # maxpool(2,2): even/odd rows via strided VMEM reads (rows are b*L + l)
        p1 = jnp.maximum(h1_ref[pl.ds(0, M2, 2), :],
                         h1_ref[pl.ds(1, M2, 2), :])              # (M2, C1)

        # ---- stage 2: conv2 (Cin=32, Cout=64, k=3, pad=1) + relu  (one MXU dot) ----
        row2 = lax.broadcasted_iota(jnp.int32, (M2, 1), 0)
        first2 = (row2 % L2) == 0
        last2 = (row2 % L2) == (L2 - 1)
        zrow2 = jnp.zeros((1, p1.shape[1]), p1.dtype)
        pm1 = jnp.where(first2, 0.0,
                        jnp.concatenate([zrow2, p1[:-1, :]], axis=0))
        pp1 = jnp.where(last2, 0.0,
                        jnp.concatenate([p1[1:, :], zrow2], axis=0))
        cols2 = jnp.concatenate([pm1, p1, pp1], axis=-1)          # (M2, 3*C1) k-major
        h2 = jnp.maximum(
            jnp.dot(cols2, w2_ref[...], preferred_element_type=f32)
            + b2_ref[...], 0.0)                                   # (M2, C2)
        h2_ref[...] = h2

        # maxpool(2,2) fused with the flatten: flat[b, l*C2 + c] (the torch
        # channel-major order is folded into wf1 at trace time).
        flat = jnp.concatenate(
            [jnp.maximum(h2_ref[pl.ds(2 * l, TB, L2), :],
                         h2_ref[pl.ds(2 * l + 1, TB, L2), :])
             for l in range(L4)], axis=-1)                        # (TB, L4*C2)

        # ---- fc1 -> relu -> fc2 (lane-dense padded output columns) ----
        h3 = jnp.maximum(
            jnp.dot(flat, wf1_ref[...], preferred_element_type=f32)
            + bf1_ref[...], 0.0)                                  # (TB, H)
        out = jnp.dot(h3, wf2_ref[...], preferred_element_type=f32) + bf2_ref[...]
        o_ref[...] = out.astype(o_ref.dtype)                      # (TB, n_pad)

    return kernel


# --------------------------------- wrapper ---------------------------------- #

def _pick_batch_tile(B, L):
    """Largest multiple-of-8 divisor of B keeping <= ~4096 activation rows/tile."""
    if B <= 8 or B % 8 != 0:
        return B
    target = max(8, min(B, max(8, (4096 // max(L, 1)) // 8 * 8)))
    for tb in range(target, 7, -8):
        if B % tb == 0:
            return tb
    return B


def cnn1d_forward(x, params):
    """x: (B, input_length) float32 — same contract as the torch module."""
    (w1c, b1c, w2c, b2c, w1f, b1f, w2f, b2f) = params
    B, L = x.shape
    assert L % 4 == 0, "two maxpool(2,2) stages require input_length % 4 == 0"
    L2, L4 = L // 2, L // 4
    c1, c2 = w1c.shape[0], w2c.shape[0]                  # 32, 64
    H = w1f.shape[0]                                     # 128
    n_cls = w2f.shape[0]
    n_pad = ((n_cls + 127) // 128) * 128                 # lane-dense fc2 output

    # ---- trace-time weight preparation (free at run time) ----
    w1m = jnp.transpose(w1c, (2, 1, 0)).reshape(3, c1)                 # (3, 32)
    w2m = jnp.transpose(w2c, (2, 1, 0)).reshape(3 * w2c.shape[1], c2)  # (96, 64)
    # fold channel-major flatten into fc1: row c*L4+l  ->  row l*c2+c
    wf1 = w1f.T.reshape(c2, L4, H).transpose(1, 0, 2).reshape(L4 * c2, H)
    wf2 = jnp.pad(w2f.T, ((0, 0), (0, n_pad - n_cls)))                 # (H, n_pad)
    bf2 = jnp.pad(b2f, (0, n_pad - n_cls))[None, :]
    b1m, b2m, bf1 = b1c[None, :], b2c[None, :], b1f[None, :]

    x_rows = x.reshape(B * L, 1)                          # rows = b*L + l

    TB = _pick_batch_tile(B, L)
    grid = (B // TB,)
    kernel = _make_fused_kernel(TB, L, L2, L4)

    def _fixed(shape):
        return pl.BlockSpec(shape, lambda i, _n=len(shape): (0,) * _n)

    out = pl.pallas_call(
        kernel,
        out_shape=jax.ShapeDtypeStruct((B, n_pad), x.dtype),
        grid=grid,
        in_specs=[
            pl.BlockSpec((TB * L, 1), lambda i: (i, 0)),
            _fixed(w1m.shape), _fixed(b1m.shape),
            _fixed(w2m.shape), _fixed(b2m.shape),
            _fixed(wf1.shape), _fixed(bf1.shape),
            _fixed(wf2.shape), _ixed_dummy(bf2.shape) if False else _fixed(bf2.shape),
        ],
        out_specs=pl.BlockSpec((TB, n_pad), lambda i: (i, 0)),
        scratch_shapes=[
            pltpu.VMEM((TB * L, c1), jnp.float32),   # pre-pool conv1 activations
            pltpu.VMEM((TB * L2, c2), jnp.float32),  # pre-pool conv2 activations
        ],
        compiler_params=pltpu.CompilerParams(
            dimension_semantics=("parallel",)),
    )(x_rows, w1m, b1m, w2m, b2m, wf1, bf1, wf2, bf2)

    return out[:, :n_cls]


# (helper used only to keep the line above syntactically inert)
def _ixed_dummy(shape):  # pragma: no cover
    return None


# ----------------------- pure-JAX reference (check) ------------------------ #

def cnn1d_reference(x, params):
    (w1c, b1c, w2c, b2c, w1f, b1f, w2f, b2f) = params
    h = x[:, None, :]                                             # (B, 1, L)
    h = jax.lax.conv_general_dilated(
        h, w1c, (1,), [(1, 1)], dimension_numbers=("NCH", "OIH", "NCH"))
    h = jnp.maximum(h + b1c[None, :, None], 0.0)
    h = jax.lax.reduce_window(h, -jnp.inf, jax.lax.max,
                              (1, 1, 2), (1, 1, 2), "VALID")
    h = jax.lax.conv_general_dilated(
        h, w2c, (1,), [(1, 1)], dimension_numbers=("NCH", "OIH", "NCH"))
    h = jnp.maximum(h + b2c[None, :, None], 0.0)
    h = jax.lax.reduce_window(h, -jnp.inf, jax.lax.max,
                              (1, 1, 2), (1, 1, 2), "VALID")
    h = h.reshape(h.shape[0], -1)
    h = jnp.maximum(h @ w1f.T + b1f, 0.0)
    return h @ w2f.T + b2f


# ---------------------------------- main ------------------------------------ #

if __name__ == "__main__":
    B, L, NUM_CLASSES = 2, 16, 4   # input_length=16 -> fc1 in = 64 * (16 // 4)

    key = jax.random.PRNGKey(0)
    ks = jax.random.split(key, 9)
    x   = jax.random.normal(ks[0], (B, L), jnp.float32)
    w1c = 0.1 * jax.random.normal(ks[1], (32, 1, 3), jnp.float32)
    b1c = 0.1 * jax.random.normal(ks[2], (32,), jnp.float32)
    w2c = 0.1 * jax.random.normal(ks[3], (64, 32, 3), jnp.float32)
    b2c = 0.1 * jax.random.normal(ks[4], (64,), jnp.float32)
    w1f = 0.1 * jax.random.normal(ks[5], (128, 64 * (L // 4)), jnp.float32)
    b1f = 0.1 * jax.random.normal(ks[6], (128,), jnp.float32)
    w2f = 0.1 * jax.random.normal(ks[7], (NUM_CLASSES, 128), jnp.float32)
    b2f = 0.1 * jax.random.normal(ks[8], (NUM_CLASSES,), jnp.float32)
    params = (w1c, b1c, w2c, b2c, w1f, b1f, w2f, b2f)

    out = jax.jit(cnn1d_forward)(x, params)
    out = jax.block_until_ready(out)
    assert out.shape == (B, NUM_CLASSES)

    ref = cnn1d_reference(x, params)
    if not jnp.allclose(out, ref, atol=2e-3, rtol=2e-3):
        raise AssertionError("Pallas CNN1D output mismatches JAX reference")

    print("KERNEL_OK")
</pallas_src>

<mosaic_0001>
module attributes {stable_mosaic.version = 11 : i64} {
  func.func @kernel(%arg0: i32, %arg1: memref<32x1xf32, #tpu.memory_space<vmem>>, %arg2: memref<3x32xf32, #tpu.memory_space<vmem>>, %arg3: memref<1x32xf32, #tpu.memory_space<vmem>>, %arg4: memref<96x64xf32, #tpu.memory_space<vmem>>, %arg5: memref<1x64xf32, #tpu.memory_space<vmem>>, %arg6: memref<256x128xf32, #tpu.memory_space<vmem>>, %arg7: memref<1x128xf32, #tpu.memory_space<vmem>>, %arg8: memref<128x128xf32, #tpu.memory_space<vmem>>, %arg9: memref<1x128xf32, #tpu.memory_space<vmem>>, %arg10: memref<2x128xf32, #tpu.memory_space<vmem>>, %arg11: memref<32x32xf32, #tpu.memory_space<vmem>>, %arg12: memref<16x64xf32, #tpu.memory_space<vmem>>) attributes {dimension_semantics = [#tpu.dimension_semantics<parallel>], iteration_bounds = array<i64: 1>, scalar_prefetch = 0 : i64, scratch_operands = 2 : i64, tpu.core_type = #tpu.core_type<tc>, window_params = [{transform_indices = @transform_0, window_bounds = array<i64: 32, 1>}, {pipeline_mode = #tpu.pipeline_mode<synchronous>, transform_indices = @transform_1, window_bounds = array<i64: 3, 32>}, {pipeline_mode = #tpu.pipeline_mode<synchronous>, transform_indices = @transform_2, window_bounds = array<i64: 1, 32>}, {pipeline_mode = #tpu.pipeline_mode<synchronous>, transform_indices = @transform_3, window_bounds = array<i64: 96, 64>}, {pipeline_mode = #tpu.pipeline_mode<synchronous>, transform_indices = @transform_4, window_bounds = array<i64: 1, 64>}, {pipeline_mode = #tpu.pipeline_mode<synchronous>, transform_indices = @transform_5, window_bounds = array<i64: 256, 128>}, {pipeline_mode = #tpu.pipeline_mode<synchronous>, transform_indices = @transform_6, window_bounds = array<i64: 1, 128>}, {pipeline_mode = #tpu.pipeline_mode<synchronous>, transform_indices = @transform_7, window_bounds = array<i64: 128, 128>}, {pipeline_mode = #tpu.pipeline_mode<synchronous>, transform_indices = @transform_8, window_bounds = array<i64: 1, 128>}, {transform_indices = @transform_9, window_bounds = array<i64: 2, 128>}]} {
    %c0 = arith.constant 0 : index
    %c0_0 = arith.constant 0 : index
    %0 = vector.load %arg1[%c0, %c0_0] : memref<32x1xf32, #tpu.memory_space<vmem>>, vector<32x1xf32>
    %1 = tpu.iota {dimensions = array<i32: 0>} : vector<32x1xi32>
    %c16_i32 = arith.constant 16 : i32
    %c0_i32 = arith.constant 0 : i32
    %2 = arith.cmpi eq, %c16_i32, %c0_i32 : i32
    %c1_i32 = arith.constant 1 : i32
    %3 = arith.select %2, %c1_i32, %c16_i32 : i32
    %4 = vector.broadcast %3 : i32 to vector<32x1xi32>
    %5 = arith.remsi %1, %4 : vector<32x1xi32>
    %c0_i32_1 = arith.constant 0 : i32
    %6 = vector.broadcast %c0_i32_1 : i32 to vector<32x1xi32>
    %7 = arith.cmpi ne, %5, %6 : vector<32x1xi32>
    %c0_i32_2 = arith.constant 0 : i32
    %8 = vector.broadcast %c0_i32_2 : i32 to vector<32x1xi32>
    %9 = arith.cmpi slt, %5, %8 : vector<32x1xi32>
    %c0_i32_3 = arith.constant 0 : i32
    %10 = arith.cmpi slt, %3, %c0_i32_3 : i32
    %11 = vector.broadcast %10 : i1 to vector<32x1xi1>
    %12 = vector.broadcast %11 : vector<32x1xi1> to vector<32x1xi1>
    %13 = arith.xori %9, %12 : vector<32x1xi1>
    %14 = arith.andi %13, %7 : vector<32x1xi1>
    %15 = vector.broadcast %3 : i32 to vector<32x1xi32>
    %16 = arith.addi %5, %15 : vector<32x1xi32>
    %17 = arith.select %14, %16, %5 : vector<32x1xi1>, vector<32x1xi32>
    %c0_i32_4 = arith.constant 0 : i32
    %18 = vector.broadcast %c0_i32_4 : i32 to vector<32x1xi32>
    %19 = arith.cmpi eq, %17, %18 : vector<32x1xi32>
    %c16_i32_5 = arith.constant 16 : i32
    %c0_i32_6 = arith.constant 0 : i32
    %20 = arith.cmpi eq, %c16_i32_5, %c0_i32_6 : i32
    %c1_i32_7 = arith.constant 1 : i32
    %21 = arith.select %20, %c1_i32_7, %c16_i32_5 : i32
    %22 = vector.broadcast %21 : i32 to vector<32x1xi32>
    %23 = arith.remsi %1, %22 : vector<32x1xi32>
    %c0_i32_8 = arith.constant 0 : i32
    %24 = vector.broadcast %c0_i32_8 : i32 to vector<32x1xi32>
    %25 = arith.cmpi ne, %23, %24 : vector<32x1xi32>
    %c0_i32_9 = arith.constant 0 : i32
    %26 = vector.broadcast %c0_i32_9 : i32 to vector<32x1xi32>
    %27 = arith.cmpi slt, %23, %26 : vector<32x1xi32>
    %c0_i32_10 = arith.constant 0 : i32
    %28 = arith.cmpi slt, %21, %c0_i32_10 : i32
    %29 = vector.broadcast %28 : i1 to vector<32x1xi1>
    %30 = vector.broadcast %29 : vector<32x1xi1> to vector<32x1xi1>
    %31 = arith.xori %27, %30 : vector<32x1xi1>
    %32 = arith.andi %31, %25 : vector<32x1xi1>
    %33 = vector.broadcast %21 : i32 to vector<32x1xi32>
    %34 = arith.addi %23, %33 : vector<32x1xi32>
    %35 = arith.select %32, %34, %23 : vector<32x1xi1>, vector<32x1xi32>
    %c15_i32 = arith.constant 15 : i32
    %36 = vector.broadcast %c15_i32 : i32 to vector<32x1xi32>
    %37 = arith.cmpi eq, %35, %36 : vector<32x1xi32>
    %cst = arith.constant 0.000000e+00 : f32
    %38 = vector.broadcast %cst : f32 to vector<1x1xf32>
    %39 = vector.extract_strided_slice %0 {offsets = [0, 0], sizes = [31, 1], strides = [1, 1]} : vector<32x1xf32> to vector<31x1xf32>
    %40 = tpu.concatenate %38, %39 in 0 : vector<1x1xf32>, vector<31x1xf32> -> vector<32x1xf32>
    %cst_11 = arith.constant 0.000000e+00 : f32
    %41 = vector.broadcast %cst_11 : f32 to vector<32x1xf32>
    %42 = arith.select %19, %41, %40 : vector<32x1xi1>, vector<32x1xf32>
    %43 = vector.extract_strided_slice %0 {offsets = [1, 0], sizes = [31, 1], strides = [1, 1]} : vector<32x1xf32> to vector<31x1xf32>
    %44 = tpu.concatenate %43, %38 in 0 : vector<31x1xf32>, vector<1x1xf32> -> vector<32x1xf32>
    %cst_12 = arith.constant 0.000000e+00 : f32
    %45 = vector.broadcast %cst_12 : f32 to vector<32x1xf32>
    %46 = arith.select %37, %45, %44 : vector<32x1xi1>, vector<32x1xf32>
    %c0_13 = arith.constant 0 : index
    %c0_14 = arith.constant 0 : index
    %47 = vector.load %arg2[%c0_13, %c0_14] : memref<3x32xf32, #tpu.memory_space<vmem>>, vector<3x32xf32>
    %48 = vector.extract_strided_slice %47 {offsets = [0, 0], sizes = [1, 32], strides = [1, 1]} : vector<3x32xf32> to vector<1x32xf32>
    %49 = vector.broadcast %42 : vector<32x1xf32> to vector<32x32xf32>
    %50 = vector.broadcast %48 : vector<1x32xf32> to vector<32x32xf32>
    %51 = arith.mulf %49, %50 : vector<32x32xf32>
    %52 = vector.extract_strided_slice %47 {offsets = [1, 0], sizes = [1, 32], strides = [1, 1]} : vector<3x32xf32> to vector<1x32xf32>
    %53 = vector.broadcast %0 : vector<32x1xf32> to vector<32x32xf32>
    %54 = vector.broadcast %52 : vector<1x32xf32> to vector<32x32xf32>
    %55 = arith.mulf %53, %54 : vector<32x32xf32>
    %56 = arith.addf %51, %55 : vector<32x32xf32>
    %57 = vector.extract_strided_slice %47 {offsets = [2, 0], sizes = [1, 32], strides = [1, 1]} : vector<3x32xf32> to vector<1x32xf32>
    %58 = vector.broadcast %46 : vector<32x1xf32> to vector<32x32xf32>
    %59 = vector.broadcast %57 : vector<1x32xf32> to vector<32x32xf32>
    %60 = arith.mulf %58, %59 : vector<32x32xf32>
    %61 = arith.addf %56, %60 : vector<32x32xf32>
    %c0_15 = arith.constant 0 : index
    %c0_16 = arith.constant 0 : index
    %62 = vector.load %arg3[%c0_15, %c0_16] : memref<1x32xf32, #tpu.memory_space<vmem>>, vector<1x32xf32>
    %63 = vector.broadcast %62 : vector<1x32xf32> to vector<32x32xf32>
    %64 = arith.addf %61, %63 : vector<32x32xf32>
    %cst_17 = arith.constant 0.000000e+00 : f32
    %65 = vector.broadcast %cst_17 : f32 to vector<32x32xf32>
    %66 = arith.maximumf %64, %65 : vector<32x32xf32>
    %c0_18 = arith.constant 0 : index
    %c0_19 = arith.constant 0 : index
    %67 = vector.load %arg11[%c0_18, %c0_19] : memref<32x32xf32, #tpu.memory_space<vmem>>, vector<32x32xf32>
    tpu.vector_store %arg11[%c0_18, %c0_19], %66 {strides = array<i32>} : memref<32x32xf32, #tpu.memory_space<vmem>>, vector<32x32xf32>,
    %c0_20 = arith.constant 0 : index
    %c0_21 = arith.constant 0 : index
    %68 = tpu.strided_load %arg11[%c0_20, %c0_21] {strides = array<i32: 2, 1>} : memref<32x32xf32, #tpu.memory_space<vmem>>, vector<16x32xf32>
    %c1 = arith.constant 1 : index
    %c0_22 = arith.constant 0 : index
    %69 = tpu.strided_load %arg11[%c1, %c0_22] {strides = array<i32: 2, 1>} : memref<32x32xf32, #tpu.memory_space<vmem>>, vector<16x32xf32>
    %70 = arith.maximumf %68, %69 : vector<16x32xf32>
    %71 = tpu.iota {dimensions = array<i32: 0>} : vector<16x1xi32>
    %c8_i32 = arith.constant 8 : i32
    %c0_i32_23 = arith.constant 0 : i32
    %72 = arith.cmpi eq, %c8_i32, %c0_i32_23 : i32
    %c1_i32_24 = arith.constant 1 : i32
    %73 = arith.select %72, %c1_i32_24, %c8_i32 : i32
    %74 = vector.broadcast %73 : i32 to vector<16x1xi32>
    %75 = arith.remsi %71, %74 : vector<16x1xi32>
    %c0_i32_25 = arith.constant 0 : i32
    %76 = vector.broadcast %c0_i32_25 : i32 to vector<16x1xi32>
    %77 = arith.cmpi ne, %75, %76 : vector<16x1xi32>
    %c0_i32_26 = arith.constant 0 : i32
    %78 = vector.broadcast %c0_i32_26 : i32 to vector<16x1xi32>
    %79 = arith.cmpi slt, %75, %78 : vector<16x1xi32>
    %c0_i32_27 = arith.constant 0 : i32
    %80 = arith.cmpi slt, %73, %c0_i32_27 : i32
    %81 = vector.broadcast %80 : i1 to vector<16x1xi1>
    %82 = vector.broadcast %81 : vector<16x1xi1> to vector<16x1xi1>
    %83 = arith.xori %79, %82 : vector<16x1xi1>
    %84 = arith.andi %83, %77 : vector<16x1xi1>
    %85 = vector.broadcast %73 : i32 to vector<16x1xi32>
    %86 = arith.addi %75, %85 : vector<16x1xi32>
    %87 = arith.select %84, %86, %75 : vector<16x1xi1>, vector<16x1xi32>
    %c0_i32_28 = arith.constant 0 : i32
    %88 = vector.broadcast %c0_i32_28 : i32 to vector<16x1xi32>
    %89 = arith.cmpi eq, %87, %88 : vector<16x1xi32>
    %c8_i32_29 = arith.constant 8 : i32
    %c0_i32_30 = arith.constant 0 : i32
    %90 = arith.cmpi eq, %c8_i32_29, %c0_i32_30 : i32
    %c1_i32_31 = arith.constant 1 : i32
    %91 = arith.select %90, %c1_i32_31, %c8_i32_29 : i32
    %92 = vector.broadcast %91 : i32 to vector<16x1xi32>
    %93 = arith.remsi %71, %92 : vector<16x1xi32>
    %c0_i32_32 = arith.constant 0 : i32
    %94 = vector.broadcast %c0_i32_32 : i32 to vector<16x1xi32>
    %95 = arith.cmpi ne, %93, %94 : vector<16x1xi32>
    %c0_i32_33 = arith.constant 0 : i32
    %96 = vector.broadcast %c0_i32_33 : i32 to vector<16x1xi32>
    %97 = arith.cmpi slt, %93, %96 : vector<16x1xi32>
    %c0_i32_34 = arith.constant 0 : i32
    %98 = arith.cmpi slt, %91, %c0_i32_34 : i32
    %99 = vector.broadcast %98 : i1 to vector<16x1xi1>
    %100 = vector.broadcast %99 : vector<16x1xi1> to vector<16x1xi1>
    %101 = arith.xori %97, %100 : vector<16x1xi1>
    %102 = arith.andi %101, %95 : vector<16x1xi1>
    %103 = vector.broadcast %91 : i32 to vector<16x1xi32>
    %104 = arith.addi %93, %103 : vector<16x1xi32>
    %105 = arith.select %102, %104, %93 : vector<16x1xi1>, vector<16x1xi32>
    %c7_i32 = arith.constant 7 : i32
    %106 = vector.broadcast %c7_i32 : i32 to vector<16x1xi32>
    %107 = arith.cmpi eq, %105, %106 : vector<16x1xi32>
    %cst_35 = arith.constant 0.000000e+00 : f32
    %108 = vector.broadcast %cst_35 : f32 to vector<1x32xf32>
    %109 = vector.extract_strided_slice %70 {offsets = [0, 0], sizes = [15, 32], strides = [1, 1]} : vector<16x32xf32> to vector<15x32xf32>
    %110 = tpu.concatenate %108, %109 in 0 : vector<1x32xf32>, vector<15x32xf32> -> vector<16x32xf32>
    %cst_36 = arith.constant 0.000000e+00 : f32
    %111 = vector.shape_cast %89 : vector<16x1xi1> to vector<16x1xi1>
    %112 = vector.broadcast %111 : vector<16x1xi1> to vector<16x32xi1>
    %113 = vector.broadcast %cst_36 : f32 to vector<16x32xf32>
    %114 = arith.select %112, %113, %110 : vector<16x32xi1>, vector<16x32xf32>
    %115 = vector.extract_strided_slice %70 {offsets = [1, 0], sizes = [15, 32], strides = [1, 1]} : vector<16x32xf32> to vector<15x32xf32>
    %116 = tpu.concatenate %115, %108 in 0 : vector<15x32xf32>, vector<1x32xf32> -> vector<16x32xf32>
    %cst_37 = arith.constant 0.000000e+00 : f32
    %117 = vector.shape_cast %107 : vector<16x1xi1> to vector<16x1xi1>
    %118 = vector.broadcast %117 : vector<16x1xi1> to vector<16x32xi1>
    %119 = vector.broadcast %cst_37 : f32 to vector<16x32xf32>
    %120 = arith.select %118, %119, %116 : vector<16x32xi1>, vector<16x32xf32>
    %121 = tpu.concatenate %114, %70, %120 in 1 : vector<16x32xf32>, vector<16x32xf32>, vector<16x32xf32> -> vector<16x96xf32>
    %c0_38 = arith.constant 0 : index
    %c0_39 = arith.constant 0 : index
    %122 = vector.load %arg4[%c0_38, %c0_39] : memref<96x64xf32, #tpu.memory_space<vmem>>, vector<96x64xf32>
    %cst_40 = arith.constant dense<0.000000e+00> : vector<16x64xf32>
    %123 = tpu.matmul %121, %122, %cst_40 {dimension_numbers = #tpu.dot_dimension_numbers<[1], [0], [0], [1], [0, 0, 1, 1], [], []>} : vector<16x96xf32>, vector<96x64xf32>, vector<16x64xf32> -> vector<16x64xf32>
    %c0_41 = arith.constant 0 : index
    %c0_42 = arith.constant 0 : index
    %124 = vector.load %arg5[%c0_41, %c0_42] : memref<1x64xf32, #tpu.memory_space<vmem>>, vector<1x64xf32>
    %125 = vector.broadcast %124 : vector<1x64xf32> to vector<16x64xf32>
    %126 = arith.addf %123, %125 : vector<16x64xf32>
    %cst_43 = arith.constant 0.000000e+00 : f32
    %127 = vector.broadcast %cst_43 : f32 to vector<16x64xf32>
    %128 = arith.maximumf %126, %127 : vector<16x64xf32>
    %c0_44 = arith.constant 0 : index
    %c0_45 = arith.constant 0 : index
    %129 = vector.load %arg12[%c0_44, %c0_45] : memref<16x64xf32, #tpu.memory_space<vmem>>, vector<16x64xf32>
    tpu.vector_store %arg12[%c0_44, %c0_45], %128 {strides = array<i32>} : memref<16x64xf32, #tpu.memory_space<vmem>>, vector<16x64xf32>,
    %c0_46 = arith.constant 0 : index
    %c0_47 = arith.constant 0 : index
    %130 = tpu.strided_load %arg12[%c0_46, %c0_47] {strides = array<i32: 8, 1>} : memref<16x64xf32, #tpu.memory_space<vmem>>, vector<2x64xf32>
    %c1_48 = arith.constant 1 : index
    %c0_49 = arith.constant 0 : index
    %131 = tpu.strided_load %arg12[%c1_48, %c0_49] {strides = array<i32: 8, 1>} : memref<16x64xf32, #tpu.memory_space<vmem>>, vector<2x64xf32>
    %132 = arith.maximumf %130, %131 : vector<2x64xf32>
    %c2 = arith.constant 2 : index
    %c0_50 = arith.constant 0 : index
    %133 = tpu.strided_load %arg12[%c2, %c0_50] {strides = array<i32: 8, 1>} : memref<16x64xf32, #tpu.memory_space<vmem>>, vector<2x64xf32>
    %c3 = arith.constant 3 : index
    %c0_51 = arith.constant 0 : index
    %134 = tpu.strided_load %arg12[%c3, %c0_51] {strides = array<i32: 8, 1>} : memref<16x64xf32, #tpu.memory_space<vmem>>, vector<2x64xf32>
    %135 = arith.maximumf %133, %134 : vector<2x64xf32>
    %c4 = arith.constant 4 : index
    %c0_52 = arith.constant 0 : index
    %136 = tpu.strided_load %arg12[%c4, %c0_52] {strides = array<i32: 8, 1>} : memref<16x64xf32, #tpu.memory_space<vmem>>, vector<2x64xf32>
    %c5 = arith.constant 5 : index
    %c0_53 = arith.constant 0 : index
    %137 = tpu.strided_load %arg12[%c5, %c0_53] {strides = array<i32: 8, 1>} : memref<16x64xf32, #tpu.memory_space<vmem>>, vector<2x64xf32>
    %138 = arith.maximumf %136, %137 : vector<2x64xf32>
    %c6 = arith.constant 6 : index
    %c0_54 = arith.constant 0 : index
    %139 = tpu.strided_load %arg12[%c6, %c0_54] {strides = array<i32: 8, 1>} : memref<16x64xf32, #tpu.memory_space<vmem>>, vector<2x64xf32>
    %c7 = arith.constant 7 : index
    %c0_55 = arith.constant 0 : index
    %140 = tpu.strided_load %arg12[%c7, %c0_55] {strides = array<i32: 8, 1>} : memref<16x64xf32, #tpu.memory_space<vmem>>, vector<2x64xf32>
    %141 = arith.maximumf %139, %140 : vector<2x64xf32>
    %142 = tpu.concatenate %132, %135, %138, %141 in 1 : vector<2x64xf32>, vector<2x64xf32>, vector<2x64xf32>, vector<2x64xf32> -> vector<2x256xf32>
    %c0_56 = arith.constant 0 : index
    %c0_57 = arith.constant 0 : index
    %143 = vector.load %arg6[%c0_56, %c0_57] : memref<256x128xf32, #tpu.memory_space<vmem>>, vector<256x128xf32>
    %cst_58 = arith.constant dense<0.000000e+00> : vector<2x128xf32>
    %144 = tpu.matmul %142, %143, %cst_58 {dimension_numbers = #tpu.dot_dimension_numbers<[1], [0], [0], [1], [0, 0, 1, 1], [], []>} : vector<2x256xf32>, vector<256x128xf32>, vector<2x128xf32> -> vector<2x128xf32>
    %c0_59 = arith.constant 0 : index
    %c0_60 = arith.constant 0 : index
    %145 = vector.load %arg7[%c0_59, %c0_60] : memref<1x128xf32, #tpu.memory_space<vmem>>, vector<1x128xf32>
    %146 = vector.broadcast %145 : vector<1x128xf32> to vector<2x128xf32>
    %147 = arith.addf %144, %146 : vector<2x128xf32>
    %cst_61 = arith.constant 0.000000e+00 : f32
    %148 = vector.broadcast %cst_61 : f32 to vector<2x128xf32>
    %149 = arith.maximumf %147, %148 : vector<2x128xf32>
    %c0_62 = arith.constant 0 : index
    %c0_63 = arith.constant 0 : index
    %150 = vector.load %arg8[%c0_62, %c0_63] : memref<128x128xf32, #tpu.memory_space<vmem>>, vector<128x128xf32>
    %cst_64 = arith.constant dense<0.000000e+00> : vector<2x128xf32>
    %151 = tpu.matmul %149, %150, %cst_64 {dimension_numbers = #tpu.dot_dimension_numbers<[1], [0], [0], [1], [0, 0, 1, 1], [], []>} : vector<2x128xf32>, vector<128x128xf32>, vector<2x128xf32> -> vector<2x128xf32>
    %c0_65 = arith.constant 0 : index
    %c0_66 = arith.constant 0 : index
    %152 = vector.load %arg9[%c0_65, %c0_66] : memref<1x128xf32, #tpu.memory_space<vmem>>, vector<1x128xf32>
    %153 = vector.broadcast %152 : vector<1x128xf32> to vector<2x128xf32>
    %154 = arith.addf %151, %153 : vector<2x128xf32>
    %c0_67 = arith.constant 0 : index
    %c0_68 = arith.constant 0 : index
    %155 = vector.load %arg10[%c0_67, %c0_68] : memref<2x128xf32, #tpu.memory_space<vmem>>, vector<2x128xf32>
    tpu.vector_store %arg10[%c0_67, %c0_68], %154 {strides = array<i32>} : memref<2x128xf32, #tpu.memory_space<vmem>>, vector<2x128xf32>,
    return
  }
  func.func @transform_0(%arg0: i32) -> (i32, i32) {
    %c0_i32 = arith.constant 0 : i32
    %c0_i32_0 = arith.constant 0 : i32
    return %arg0, %c0_i32 : i32, i32
  }
  func.func @transform_1(%arg0: i32) -> (i32, i32) {
    %c0_i32 = arith.constant 0 : i32
    %c0_i32_0 = arith.constant 0 : i32
    %c0_i32_1 = arith.constant 0 : i32
    return %c0_i32, %c0_i32_0 : i32, i32
  }
  func.func @transform_2(%arg0: i32) -> (i32, i32) {
    %c0_i32 = arith.constant 0 : i32
    %c0_i32_0 = arith.constant 0 : i32
    %c0_i32_1 = arith.constant 0 : i32
    return %c0_i32, %c0_i32_0 : i32, i32
  }
  func.func @transform_3(%arg0: i32) -> (i32, i32) {
    %c0_i32 = arith.constant 0 : i32
    %c0_i32_0 = arith.constant 0 : i32
    %c0_i32_1 = arith.constant 0 : i32
    return %c0_i32, %c0_i32_0 : i32, i32
  }
  func.func @transform_4(%arg0: i32) -> (i32, i32) {
    %c0_i32 = arith.constant 0 : i32
    %c0_i32_0 = arith.constant 0 : i32
    %c0_i32_1 = arith.constant 0 : i32
    return %c0_i32, %c0_i32_0 : i32, i32
  }
  func.func @transform_5(%arg0: i32) -> (i32, i32) {
    %c0_i32 = arith.constant 0 : i32
    %c0_i32_0 = arith.constant 0 : i32
    %c0_i32_1 = arith.constant 0 : i32
    return %c0_i32, %c0_i32_0 : i32, i32
  }
  func.func @transform_6(%arg0: i32) -> (i32, i32) {
    %c0_i32 = arith.constant 0 : i32
    %c0_i32_0 = arith.constant 0 : i32
    %c0_i32_1 = arith.constant 0 : i32
    return %c0_i32, %c0_i32_0 : i32, i32
  }
  func.func @transform_7(%arg0: i32) -> (i32, i32) {
    %c0_i32 = arith.constant 0 : i32
    %c0_i32_0 = arith.constant 0 : i32
    %c0_i32_1 = arith.constant 0 : i32
    return %c0_i32, %c0_i32_0 : i32, i32
  }
  func.func @transform_8(%arg0: i32) -> (i32, i32) {
    %c0_i32 = arith.constant 0 : i32
    %c0_i32_0 = arith.constant 0 : i32
    %c0_i32_1 = arith.constant 0 : i32
    return %c0_i32, %c0_i32_0 : i32, i32
  }
  func.func @transform_9(%arg0: i32) -> (i32, i32) {
    %c0_i32 = arith.constant 0 : i32
    %c0_i32_0 = arith.constant 0 : i32
    return %arg0, %c0_i32 : i32, i32
  }
}

</mosaic_0001>

<llo_original>
// kernel: cnn1d_forward.1
$region0: #{cnn1d_forward.1}
  #allocation0 [shape = 'u32[]', space=smem, size = 0x4, offset = 0x4, fixed_abs, tag = 'smem constant byte address 0x4 - core index']
  #allocation1 [shape = 'u32[144,128]{1,0:T(1,128)}', space=vmem, size = 0x12000, scoped, tag = 'internal scratch']
  #allocation2 [shape = 'f32[32,32]{1,0:T(8,128)}', space=vmem, size = 0x4000, scoped, tag = 'scratch operand']
  #allocation3 [shape = 'f32[16,64]{1,0:T(8,128)}', space=vmem, size = 0x2000, scoped, tag = 'scratch operand']
  %s0 = inlined_call_operand.vmem [shape: f32[32,1], index: 0, kind: input, shape index: {}]
  %s1 = inlined_call_operand.vmem [shape: f32[3,32], index: 1, kind: input, shape index: {}]
  %s2 = inlined_call_operand.vmem [shape: f32[1,32], index: 2, kind: input, shape index: {}]
  %s3 = inlined_call_operand.vmem [shape: f32[96,64], index: 3, kind: input, shape index: {}]
  %s4 = inlined_call_operand.vmem [shape: f32[1,64], index: 4, kind: input, shape index: {}]
  %s5 = inlined_call_operand.vmem [shape: f32[256,128], index: 5, kind: input, shape index: {}]
  %s6 = inlined_call_operand.vmem [shape: f32[1,128], index: 6, kind: input, shape index: {}]
  %s7 = inlined_call_operand.vmem [shape: f32[128,128], index: 7, kind: input, shape index: {}]
  %s8 = inlined_call_operand.vmem [shape: f32[1,128], index: 8, kind: input, shape index: {}]
  %s9 = inlined_call_operand.hbm [shape: f32[2,128], index: 9, kind: output, shape index: {}]
  %s10 = sld [smem:[#allocation0]]
  $region46: #{cnn1d_forward.1} parent=0
    _
  %s12 = ssub.s32 1, %s10
  %s13 = scalar_select 0, %s12, %s10
  $region1: #{cnn1d_forward.1} parent=0
    #allocation4 [shape = 'u8[1024]{0}', space=vmem, size = 0x400, scoped, tag = 'output window, operand 0, single buffered']
    #allocation5 [shape = 's32[1]{0}', space=sflag, size = 0x4, scoped, tag = 'scoped memory for cnn1d_forward.1']
    %14 = vsyncpa [#allocation5], 0
    // Predicated region
    $region2: #{cnn1d_forward.1} parent=1 // pred_check
      _
    $region3: #{cnn1d_forward.1} parent=1 // pred_check_branch
      %16 = sbr.rel (0) target = $region5
    $region4: #{cnn1d_forward.1} parent=1 // pred_region
      _
    $region5: #{cnn1d_forward.1} parent=1 // pred_fallthru
      _
    // Predicated region
    $region6: #{cnn1d_forward.1} parent=1 // pred_check
      _
    $region7: #{cnn1d_forward.1} parent=1 // pred_check_branch
      %18 = sbr.rel (0) target = $region9
    $region8: #{cnn1d_forward.1} parent=1 // pred_region
      _
    $region9: #{cnn1d_forward.1} parent=1 // pred_fallthru
      _
    // Predicated region
    $region10: #{cnn1d_forward.1} parent=1 // pred_check
      _
    $region11: #{cnn1d_forward.1} parent=1 // pred_check_branch
      %20 = sbr.rel (0) target = $region13
    $region12: #{cnn1d_forward.1} parent=1 // pred_region
      _
    $region13: #{cnn1d_forward.1} parent=1 // pred_fallthru
      _
    // Predicated region
    $region14: #{cnn1d_forward.1} parent=1 // pred_check
      _
    $region15: #{cnn1d_forward.1} parent=1 // pred_check_branch
      %22 = sbr.rel (0) target = $region17
    $region16: #{cnn1d_forward.1} parent=1 // pred_region
      _
    $region17: #{cnn1d_forward.1} parent=1 // pred_fallthru
      _
    // Predicated region
    $region18: #{cnn1d_forward.1} parent=1 // pred_check
      _
    $region19: #{cnn1d_forward.1} parent=1 // pred_check_branch
      %24 = sbr.rel (0) target = $region21
    $region20: #{cnn1d_forward.1} parent=1 // pred_region
      _
    $region21: #{cnn1d_forward.1} parent=1 // pred_fallthru
      _
    // Predicated region
    $region22: #{cnn1d_forward.1} parent=1 // pred_check
      _
    $region23: #{cnn1d_forward.1} parent=1 // pred_check_branch
      %26 = sbr.rel (0) target = $region25
    $region24: #{cnn1d_forward.1} parent=1 // pred_region
      _
    $region25: #{cnn1d_forward.1} parent=1 // pred_fallthru
      _
    // Predicated region
    $region26: #{cnn1d_forward.1} parent=1 // pred_check
      _
    $region27: #{cnn1d_forward.1} parent=1 // pred_check_branch
      %28 = sbr.rel (0) target = $region29
    $region28: #{cnn1d_forward.1} parent=1 // pred_region
      _
    $region29: #{cnn1d_forward.1} parent=1 // pred_fallthru
      _
    // Predicated region
    $region30: #{cnn1d_forward.1} parent=1 // pred_check
      _
    $region31: #{cnn1d_forward.1} parent=1 // pred_check_branch
      %30 = sbr.rel (0) target = $region33
    $region32: #{cnn1d_forward.1} parent=1 // pred_region
      _
    $region33: #{cnn1d_forward.1} parent=1 // pred_fallthru
      _
    // Predicated region
    $region34: #{cnn1d_forward.1} parent=1 // pred_check
      _
    $region35: #{cnn1d_forward.1} parent=1 // pred_check_branch
      %32 = sbr.rel (0) target = $region37
    $region36: #{cnn1d_forward.1} parent=1 // pred_region
      _
    $region37: #{cnn1d_forward.1} parent=1 // pred_fallthru
      _
    %v33 = vld [vmem:[%s0] sm:$0xff]
    %v34 = vld [vmem:[%s0 + $0x8] sm:$0xff]
    %v35 = vld [vmem:[%s0 + $0x10] sm:$0xff]
    %v36 = vld [vmem:[%s0 + $0x18] sm:$0xff]
    %v37 = vlaneseq
    %v38 = vshrl.u32 %v37, 7
    %v39 = vadd.s32 %v38, 8
    %v40 = vadd.s32 %v38, 16
    %v41 = vadd.s32 %v38, 24
    %vm42 = vcmp.lt.s32.totalorder %v38, 0
    %v43 = vsub.s32 0, %v38
    %v44 = vsel %vm42, %v43, %v38
    %v45 = vshrl.u32 %v44, 4
    %v46 = vand.u32 %v44, 15
    %v47 = vsub.s32 0, %v46
    %v48 = vsel %vm42, %v47, %v46
    %vm49 = vcmp.lt.s32.totalorder %v39, 0
    %v50 = vsub.s32 0, %v39
    %v51 = vsel %vm49, %v50, %v39
    %v52 = vshrl.u32 %v51, 4
    %v53 = vand.u32 %v51, 15
    %v54 = vsub.s32 0, %v53
    %v55 = vsel %vm49, %v54, %v53
    %vm56 = vcmp.lt.s32.totalorder %v40, 0
    %v57 = vsub.s32 0, %v40
    %v58 = vsel %vm56, %v57, %v40
    %v59 = vshrl.u32 %v58, 4
    %v60 = vand.u32 %v58, 15
    %v61 = vsub.s32 0, %v60
    %v62 = vsel %vm56, %v61, %v60
    %vm63 = vcmp.lt.s32.totalorder %v41, 0
    %v64 = vsub.s32 0, %v41
    %v65 = vsel %vm63, %v64, %v41
    %v66 = vshrl.u32 %v65, 4
    %v67 = vand.u32 %v65, 15
    %v68 = vsub.s32 0, %v67
    %v69 = vsel %vm63, %v68, %v67
    %vm70 = vcmp.ne.s32.totalorder %v48, 0
    %vm71 = vcmp.ne.s32.totalorder %v55, 0
    %vm72 = vcmp.ne.s32.totalorder %v62, 0
    %vm73 = vcmp.ne.s32.totalorder %v69, 0
    %vm74 = vcmp.lt.s32.totalorder %v48, 0
    %vm75 = vcmp.lt.s32.totalorder %v55, 0
    %vm76 = vcmp.lt.s32.totalorder %v62, 0
    %vm77 = vcmp.lt.s32.totalorder %v69, 0
    %vm78 = vmand %vm74, %vm70
    %vm79 = vmand %vm75, %vm71
    %vm80 = vmand %vm76, %vm72
    %vm81 = vmand %vm77, %vm73
    %v82 = vadd.s32 %v48, 16
    %v83 = vadd.s32 %v55, 16
    %v84 = vadd.s32 %v62, 16
    %v85 = vadd.s32 %v69, 16
    %v86 = vsel %vm78, %v82, %v48
    %v87 = vsel %vm79, %v83, %v55
    %v88 = vsel %vm80, %v84, %v62
    %v89 = vsel %vm81, %v85, %v69
    %vm90 = vcmp.eq.s32.totalorder %v86, 0
    %vm91 = vcmp.eq.s32.totalorder %v87, 0
    %vm92 = vcmp.eq.s32.totalorder %v88, 0
    %vm93 = vcmp.eq.s32.totalorder %v89, 0
    %vm94 = vcmp.eq.s32.totalorder %v86, 15
    %vm95 = vcmp.eq.s32.totalorder %v87, 15
    %vm96 = vcmp.eq.s32.totalorder %v88, 15
    %vm97 = vcmp.eq.s32.totalorder %v89, 15
    %vm102 = vcmask 1040384
    %v103 = vrot.slane %v33, 7
    %v104 = vrot.slane %v34, 7
    %v105 = vsel %vm102, %v103, %v104
    %v106 = vrot.slane %v35, 7
    %v107 = vsel %vm102, %v104, %v106
    %v108 = vrot.slane %v36, 7
    %v109 = vsel %vm102, %v106, %v108
    %v114 = vsel %vm102, 0.0, %v103
    %v115 = vsel %vm90, 0.0, %v114
    %v116 = vsel %vm91, 0.0, %v105
    %v117 = vsel %vm92, 0.0, %v107
    %v118 = vsel %vm93, 0.0, %v109
    %vm119 = vcmask 1046528
    %v120 = vrot.slane %v33, 1
    %v121 = vrot.slane %v34, 1
    %v122 = vsel %vm119, %v120, %v121
    %v123 = vrot.slane %v35, 1
    %v124 = vsel %vm119, %v121, %v123
    %v125 = vrot.slane %v36, 1
    %v126 = vsel %vm119, %v123, %v125
    %v131 = vsel %vm119, %v125, 0.0
    %v132 = vsel %vm94, 0.0, %v122
    %v133 = vsel %vm95, 0.0, %v124
    %v134 = vsel %vm96, 0.0, %v126
    %v135 = vsel %vm97, 0.0, %v131
    %v136 = vld [vmem:[%s1] sm:$0x7]
    %138 = vset.pattern.permute.xlu0 0
    %139 = vperm.xlu0 %138, %v115
    %v140 = vpop.permute.xlu0 %139
    %143 = vset.pattern.permute.xlu0 0
    %144 = vperm.xlu0 %143, %v116
    %v145 = vpop.permute.xlu0 %144
    %148 = vset.pattern.permute.xlu0 0
    %149 = vperm.xlu0 %148, %v117
    %v150 = vpop.permute.xlu0 %149
    %153 = vset.pattern.permute.xlu0 0
    %154 = vperm.xlu0 %153, %v118
    %v155 = vpop.permute.xlu0 %154
    %v157 = vlaneseq
    %v158 = vshrl.u32 %v157, 7
    %v159 = vsub.s32 0, %v158
    %v160 = vrot.slane %v136, %v159
    %v161 = vmul.f32 %v140, %v160
    %v162 = vmul.f32 %v145, %v160
    %v163 = vmul.f32 %v150, %v160
    %v164 = vmul.f32 %v155, %v160
    %165 = vset.pattern.permute.xlu0 0
    %166 = vperm.xlu0 %165, %v33
    %v167 = vpop.permute.xlu0 %166
    %169 = vset.pattern.permute.xlu0 0
    %170 = vperm.xlu0 %169, %v34
    %v171 = vpop.permute.xlu0 %170
    %173 = vset.pattern.permute.xlu0 0
    %174 = vperm.xlu0 %173, %v35
    %v175 = vpop.permute.xlu0 %174
    %177 = vset.pattern.permute.xlu0 0
    %178 = vperm.xlu0 %177, %v36
    %v179 = vpop.permute.xlu0 %178
    %v181 = vlaneseq
    %v182 = vshrl.u32 %v181, 7
    %v183 = vsub.s32 1, %v182
    %v184 = vrot.slane %v136, %v183
    %v185 = vmul.f32 %v167, %v184
    %v186 = vmul.f32 %v171, %v184
    %v187 = vmul.f32 %v175, %v184
    %v188 = vmul.f32 %v179, %v184
    %v189 = vadd.f32 %v161, %v185
    %v190 = vadd.f32 %v162, %v186
    %v191 = vadd.f32 %v163, %v187
    %v192 = vadd.f32 %v164, %v188
    %194 = vset.pattern.permute.xlu0 0
    %195 = vperm.xlu0 %194, %v132
    %v196 = vpop.permute.xlu0 %195
    %199 = vset.pattern.permute.xlu0 0
    %200 = vperm.xlu0 %199, %v133
    %v201 = vpop.permute.xlu0 %200
    %204 = vset.pattern.permute.xlu0 0
    %205 = vperm.xlu0 %204, %v134
    %v206 = vpop.permute.xlu0 %205
    %209 = vset.pattern.permute.xlu0 0
    %210 = vperm.xlu0 %209, %v135
    %v211 = vpop.permute.xlu0 %210
    %v213 = vlaneseq
    %v214 = vshrl.u32 %v213, 7
    %v215 = vsub.s32 2, %v214
    %v216 = vrot.slane %v136, %v215
    %v217 = vmul.f32 %v196, %v216
    %v218 = vmul.f32 %v201, %v216
    %v219 = vmul.f32 %v206, %v216
    %v220 = vmul.f32 %v211, %v216
    %v221 = vadd.f32 %v189, %v217
    %v222 = vadd.f32 %v190, %v218
    %v223 = vadd.f32 %v191, %v219
    %v224 = vadd.f32 %v192, %v220
    %v225 = vld [vmem:[%s2] sm:$0x1]
    %v227 = vlaneseq
    %v228 = vshrl.u32 %v227, 7
    %v229 = vsub.s32 0, %v228
    %v230 = vrot.slane %v225, %v229
    %v232 = vadd.f32 %v221, %v230
    %v233 = vadd.f32 %v222, %v230
    %v234 = vadd.f32 %v223, %v230
    %v235 = vadd.f32 %v224, %v230
    %v236 = vmax.f32 %v232, 0.0
    %v237 = vmax.f32 %v233, 0.0
    %v238 = vmax.f32 %v234, 0.0
    %v239 = vmax.f32 %v235, 0.0
    %vm240 = vcmask 261120
    %241 = vst.msk [vmem:[#allocation2] sm:$0xff] %vm240, %v236
    %242 = vst.msk [vmem:[#allocation2 + $0x8] sm:$0xff] %vm240, %v237
    %243 = vst.msk [vmem:[#allocation2 + $0x10] sm:$0xff] %vm240, %v238
    %244 = vst.msk [vmem:[#allocation2 + $0x18] sm:$0xff] %vm240, %v239
    %v245 = vld [vmem:[#allocation2] ss:$2 sm:$0xff]
    %s246 = scalar_lea.vmem [#allocation2], 16
    %v247 = vld [vmem:[%s246] ss:$2 sm:$0xff]
    %s248 = scalar_lea.vmem [#allocation2], 1
    %v249 = vld [vmem:[%s248] ss:$2 sm:$0xff]
    %s250 = scalar_lea.vmem [#allocation2], 17
    %v251 = vld [vmem:[%s250] ss:$2 sm:$0xff]
    %v252 = vmax.f32 %v245, %v249
    %v253 = vmax.f32 %v247, %v251
    %vm254 = vcmp.lt.s32.totalorder %v38, 0
    %v255 = vsub.s32 0, %v38
    %v256 = vsel %vm254, %v255, %v38
    %v257 = vshrl.u32 %v256, 3
    %v258 = vand.u32 %v256, 7
    %v259 = vsub.s32 0, %v258
    %v260 = vsel %vm254, %v259, %v258
    %vm261 = vcmp.lt.s32.totalorder %v39, 0
    %v262 = vsub.s32 0, %v39
    %v263 = vsel %vm261, %v262, %v39
    %v264 = vshrl.u32 %v263, 3
    %v265 = vand.u32 %v263, 7
    %v266 = vsub.s32 0, %v265
    %v267 = vsel %vm261, %v266, %v265
    %vm268 = vcmp.ne.s32.totalorder %v260, 0
    %vm269 = vcmp.ne.s32.totalorder %v267, 0
    %vm270 = vcmp.lt.s32.totalorder %v260, 0
    %vm271 = vcmp.lt.s32.totalorder %v267, 0
    %vm272 = vmand %vm270, %vm268
    %vm273 = vmand %vm271, %vm269
    %v274 = vadd.s32 %v260, 8
    %v275 = vadd.s32 %v267, 8
    %v276 = vsel %vm272, %v274, %v260
    %v277 = vsel %vm273, %v275, %v267
    %vm278 = vcmp.eq.s32.totalorder %v276, 0
    %vm279 = vcmp.eq.s32.totalorder %v277, 0
    %vm280 = vcmp.eq.s32.totalorder %v276, 7
    %vm281 = vcmp.eq.s32.totalorder %v277, 7
    %v284 = vrot.slane %v252, 7
    %v285 = vrot.slane %v253, 7
    %v286 = vsel %vm102, %v284, %v285
    %v289 = vsel %vm102, 0.0, %v284
    %v290 = vsel %vm278, 1, 0
    %v291 = vsel %vm279, 1, 0
    %vm292 = vcmp.eq.s32.totalorder %v290, 1
    %vm293 = vcmp.eq.s32.totalorder %v291, 1
    %v294 = vsel %vm292, 0.0, %v289
    %v295 = vsel %vm293, 0.0, %v286
    %v296 = vrot.slane %v252, 1
    %v297 = vrot.slane %v253, 1
    %v298 = vsel %vm119, %v296, %v297
    %v301 = vsel %vm119, %v297, 0.0
    %v302 = vsel %vm280, 1, 0
    %v303 = vsel %vm281, 1, 0
    %vm304 = vcmp.eq.s32.totalorder %v302, 1
    %vm305 = vcmp.eq.s32.totalorder %v303, 1
    %v306 = vsel %vm304, 0.0, %v298
    %v307 = vsel %vm305, 0.0, %v301
    %308 = vrot.lane.b32.xlu0 %v252, 32
    %v309 = vpop.permute.xlu0 %308
    %310 = vrot.lane.b32.xlu0 %v253, 32
    %v311 = vpop.permute.xlu0 %310
    %316 = vrot.lane.b32.xlu0 %v306, 64
    %v317 = vpop.permute.xlu0 %316
    %318 = vrot.lane.b32.xlu0 %v307, 64
    %v319 = vpop.permute.xlu0 %318
    %v322 = vsel %vm240, %v294, %v309
    %v323 = vsel %vm240, %v295, %v311
    %vm324 = vcmask 523264
    %v325 = vsel %vm324, %v322, %v317
    %v326 = vsel %vm324, %v323, %v319
    %v327 = vld [vmem:[%s3] sm:$0xff]
    %v328 = vld [vmem:[%s3 + $0x8] sm:$0xff]
    %v329 = vld [vmem:[%s3 + $0x10] sm:$0xff]
    %v330 = vld [vmem:[%s3 + $0x18] sm:$0xff]
    %v331 = vld [vmem:[%s3 + $0x20] sm:$0xff]
    %v332 = vld [vmem:[%s3 + $0x28] sm:$0xff]
    %v333 = vld [vmem:[%s3 + $0x30] sm:$0xff]
    %v334 = vld [vmem:[%s3 + $0x38] sm:$0xff]
    %v335 = vld [vmem:[%s3 + $0x40] sm:$0xff]
    %v336 = vld [vmem:[%s3 + $0x48] sm:$0xff]
    %v337 = vld [vmem:[%s3 + $0x50] sm:$0xff]
    %v338 = vld [vmem:[%s3 + $0x58] sm:$0xff]
    %v339 = vld [vmem:[%s4] sm:$0x1]
    %v341 = vlaneseq
    %v342 = vshrl.u32 %v341, 7
    %v343 = vsub.s32 0, %v342
    %v344 = vrot.slane %v339, %v343
    %vm346 = vcmask 785408
    %v348 = vsel %vm346, %v325, 0
    %v351 = vsel %vm346, %v326, 0
    %353 = vmatprep.subr.mxu0 0.0
    %354 = vmatpush1.msra.mxu0 0.0
    %355 = vmatprep.subr.mxu0 0.0
    %356 = vmatpush1.msra.mxu0 0.0
    %357 = vmatprep.subr.mxu0 0.0
    %358 = vmatpush1.msra.mxu0 0.0
    %359 = vmatprep.subr.mxu0 0.0
    %360 = vmatpush1.msra.mxu0 0.0
    %361 = vmatprep.subr.mxu0 0.0
    %362 = vmatpush1.msra.mxu0 %v338
    %363 = vmatprep.subr.mxu0 0.0
    %364 = vmatpush1.msra.mxu0 %v337
    %365 = vmatprep.subr.mxu0 0.0
    %366 = vmatpush1.msra.mxu0 %v336
    %367 = vmatprep.subr.mxu0 0.0
    %368 = vmatpush1.msra.mxu0 %v335
    %369 = vmatprep.subr.mxu0 0.0
    %370 = vmatpush1.msra.mxu0 %v334
    %371 = vmatprep.subr.mxu0 0.0
    %372 = vmatpush1.msra.mxu0 %v333
    %373 = vmatprep.subr.mxu0 0.0
    %374 = vmatpush1.msra.mxu0 %v332
    %375 = vmatprep.subr.mxu0 0.0
    %376 = vmatpush1.msra.mxu0 %v331
    %377 = vmatprep.subr.mxu0 0.0
    %378 = vmatpush1.msra.mxu0 %v330
    %379 = vmatprep.subr.mxu0 0.0
    %380 = vmatpush1.msra.mxu0 %v329
    %381 = vmatprep.subr.mxu0 0.0
    %382 = vmatpush1.msra.mxu0 %v328
    %383 = vmatprep.subr.mxu0 0.0
    %384 = vmatpush1.msra.mxu0 %v327
    %385 = vmatprep.subr.mxu0 0.0
    %386 = vmatpush2.msra.mxu0 0.0
    %387 = vmatprep.subr.mxu0 0.0
    %388 = vmatpush2.msra.mxu0 0.0
    %389 = vmatprep.subr.mxu0 0.0
    %390 = vmatpush2.msra.mxu0 0.0
    %391 = vmatprep.subr.mxu0 0.0
    %392 = vmatpush2.msra.mxu0 0.0
    %393 = vmatprep.subr.mxu0 0.0
    %394 = vmatpush2.msra.mxu0 0.0
    %395 = vmatprep.subr.mxu0 0.0
    %396 = vmatpush2.msra.mxu0 0.0
    %397 = vmatprep.subr.mxu0 0.0
    %398 = vmatpush2.msra.mxu0 0.0
    %399 = vmatprep.subr.mxu0 0.0
    %400 = vmatpush2.msra.mxu0 0.0
    %401 = vmatprep.subr.mxu0 0.0
    %402 = vmatpush2.msra.mxu0 0.0
    %403 = vmatprep.subr.mxu0 0.0
    %404 = vmatpush2.msra.mxu0 0.0
    %405 = vmatprep.subr.mxu0 0.0
    %406 = vmatpush2.msra.mxu0 0.0
    %407 = vmatprep.subr.mxu0 0.0
    %408 = vmatpush2.msra.mxu0 0.0
    %409 = vmatprep.subr.mxu0 0.0
    %410 = vmatpush2.msra.mxu0 0.0
    %411 = vmatprep.subr.mxu0 0.0
    %412 = vmatpush2.msra.mxu0 0.0
    %413 = vmatprep.subr.mxu0 0.0
    %414 = vmatpush2.msra.mxu0 0.0
    %415 = vmatprep.subr.mxu0 0.0
    %416 = vmatpush2.msra.mxu0 0.0
    %417 = vmatprep.mubr.f32.mxu0 0.0
    %418 = vmatmul.mubr.f32.gmra.mxu0 %v348
    %v419 = vpop.f32.mrf.mxu0
    %v420 = vadd.f32 %v344, %v419
    %v421 = vpop.f32.mrf.mxu0
    %422 = vmatprep.mubr.f32.mxu0 0.0
    %423 = vmatmul.mubr.f32.gmra.mxu0 %v351
    %v424 = vpop.f32.mrf.mxu0
    %v425 = vadd.f32 %v344, %v424
    %v426 = vpop.f32.mrf.mxu0
    %427 = vdwg.mxu0
    %v428 = vmax.f32 %v420, 0.0
    %v429 = vmax.f32 %v425, 0.0
    %430 = vst.msk [vmem:[#allocation3] sm:$0xff] %vm324, %v428
    %431 = vst.msk [vmem:[#allocation3 + $0x8] sm:$0xff] %vm324, %v429
    %v432 = vld [vmem:[#allocation3] ss:$8 sm:$0x3]
    %s433 = scalar_lea.vmem [#allocation3], 1
    %v434 = vld [vmem:[%s433] ss:$8 sm:$0x3]
    %v435 = vmax.f32 %v432, %v434
    %s436 = scalar_lea.vmem [#allocation3], 2
    %v437 = vld [vmem:[%s436] ss:$8 sm:$0x3]
    %s438 = scalar_lea.vmem [#allocation3], 3
    %v439 = vld [vmem:[%s438] ss:$8 sm:$0x3]
    %v440 = vmax.f32 %v437, %v439
    %s441 = scalar_lea.vmem [#allocation3], 4
    %v442 = vld [vmem:[%s441] ss:$8 sm:$0x3]
    %s443 = scalar_lea.vmem [#allocation3], 5
    %v444 = vld [vmem:[%s443] ss:$8 sm:$0x3]
    %v445 = vmax.f32 %v442, %v444
    %s446 = scalar_lea.vmem [#allocation3], 6
    %v447 = vld [vmem:[%s446] ss:$8 sm:$0x3]
    %s448 = scalar_lea.vmem [#allocation3], 7
    %v449 = vld [vmem:[%s448] ss:$8 sm:$0x3]
    %v450 = vmax.f32 %v447, %v449
    %452 = vrot.lane.b32.xlu0 %v440, 64
    %v453 = vpop.permute.xlu0 %452
    %456 = vrot.lane.b32.xlu0 %v450, 64
    %v457 = vpop.permute.xlu0 %456
    %v459 = vsel %vm324, %v435, %v453
    %v460 = vsel %vm324, %v445, %v457
    %v461 = vld [vmem:[%s5] sm:$0xff]
    %v462 = vld [vmem:[%s5 + $0x8] sm:$0xff]
    %v463 = vld [vmem:[%s5 + $0x10] sm:$0xff]
    %v464 = vld [vmem:[%s5 + $0x18] sm:$0xff]
    %v465 = vld [vmem:[%s5 + $0x20] sm:$0xff]
    %v466 = vld [vmem:[%s5 + $0x28] sm:$0xff]
    %v467 = vld [vmem:[%s5 + $0x30] sm:$0xff]
    %v468 = vld [vmem:[%s5 + $0x38] sm:$0xff]
    %v469 = vld [vmem:[%s5 + $0x40] sm:$0xff]
    %v470 = vld [vmem:[%s5 + $0x48] sm:$0xff]
    %v471 = vld [vmem:[%s5 + $0x50] sm:$0xff]
    %v472 = vld [vmem:[%s5 + $0x58] sm:$0xff]
    %v473 = vld [vmem:[%s5 + $0x60] sm:$0xff]
    %v474 = vld [vmem:[%s5 + $0x68] sm:$0xff]
    %v475 = vld [vmem:[%s5 + $0x70] sm:$0xff]
    %v476 = vld [vmem:[%s5 + $0x78] sm:$0xff]
    %v477 = vld [vmem:[%s5 + $0x80] sm:$0xff]
    %v478 = vld [vmem:[%s5 + $0x88] sm:$0xff]
    %v479 = vld [vmem:[%s5 + $0x90] sm:$0xff]
    %v480 = vld [vmem:[%s5 + $0x98] sm:$0xff]
    %v481 = vld [vmem:[%s5 + $0xa0] sm:$0xff]
    %v482 = vld [vmem:[%s5 + $0xa8] sm:$0xff]
    %v483 = vld [vmem:[%s5 + $0xb0] sm:$0xff]
    %v484 = vld [vmem:[%s5 + $0xb8] sm:$0xff]
    %v485 = vld [vmem:[%s5 + $0xc0] sm:$0xff]
    %v486 = vld [vmem:[%s5 + $0xc8] sm:$0xff]
    %v487 = vld [vmem:[%s5 + $0xd0] sm:$0xff]
    %v488 = vld [vmem:[%s5 + $0xd8] sm:$0xff]
    %v489 = vld [vmem:[%s5 + $0xe0] sm:$0xff]
    %v490 = vld [vmem:[%s5 + $0xe8] sm:$0xff]
    %v491 = vld [vmem:[%s5 + $0xf0] sm:$0xff]
    %v492 = vld [vmem:[%s5 + $0xf8] sm:$0xff]
    %v493 = vld [vmem:[%s6] sm:$0x1]
    %v495 = vlaneseq
    %v496 = vshrl.u32 %v495, 7
    %v497 = vsub.s32 0, %v496
    %v498 = vrot.slane %v493, %v497
    %500 = vmatprep.subr.mxu0 0.0
    %501 = vmatpush1.msra.mxu0 %v476
    %502 = vmatprep.subr.mxu0 0.0
    %503 = vmatpush1.msra.mxu0 %v475
    %504 = vmatprep.subr.mxu0 0.0
    %505 = vmatpush1.msra.mxu0 %v474
    %506 = vmatprep.subr.mxu0 0.0
    %507 = vmatpush1.msra.mxu0 %v473
    %508 = vmatprep.subr.mxu0 0.0
    %509 = vmatpush1.msra.mxu0 %v472
    %510 = vmatprep.subr.mxu0 0.0
    %511 = vmatpush1.msra.mxu0 %v471
    %512 = vmatprep.subr.mxu0 0.0
    %513 = vmatpush1.msra.mxu0 %v470
    %514 = vmatprep.subr.mxu0 0.0
    %515 = vmatpush1.msra.mxu0 %v469
    %516 = vmatprep.subr.mxu0 0.0
    %517 = vmatpush1.msra.mxu0 %v468
    %518 = vmatprep.subr.mxu0 0.0
    %519 = vmatpush1.msra.mxu0 %v467
    %520 = vmatprep.subr.mxu0 0.0
    %521 = vmatpush1.msra.mxu0 %v466
    %522 = vmatprep.subr.mxu0 0.0
    %523 = vmatpush1.msra.mxu0 %v465
    %524 = vmatprep.subr.mxu0 0.0
    %525 = vmatpush1.msra.mxu0 %v464
    %526 = vmatprep.subr.mxu0 0.0
    %527 = vmatpush1.msra.mxu0 %v463
    %528 = vmatprep.subr.mxu0 0.0
    %529 = vmatpush1.msra.mxu0 %v462
    %530 = vmatprep.subr.mxu0 0.0
    %531 = vmatpush1.msra.mxu0 %v461
    %532 = vmatprep.subr.mxu0 0.0
    %533 = vmatpush2.msra.mxu0 %v492
    %534 = vmatprep.subr.mxu0 0.0
    %535 = vmatpush2.msra.mxu0 %v491
    %536 = vmatprep.subr.mxu0 0.0
    %537 = vmatpush2.msra.mxu0 %v490
    %538 = vmatprep.subr.mxu0 0.0
    %539 = vmatpush2.msra.mxu0 %v489
    %540 = vmatprep.subr.mxu0 0.0
    %541 = vmatpush2.msra.mxu0 %v488
    %542 = vmatprep.subr.mxu0 0.0
    %543 = vmatpush2.msra.mxu0 %v487
    %544 = vmatprep.subr.mxu0 0.0
    %545 = vmatpush2.msra.mxu0 %v486
    %546 = vmatprep.subr.mxu0 0.0
    %547 = vmatpush2.msra.mxu0 %v485
    %548 = vmatprep.subr.mxu0 0.0
    %549 = vmatpush2.msra.mxu0 %v484
    %550 = vmatprep.subr.mxu0 0.0
    %551 = vmatpush2.msra.mxu0 %v483
    %552 = vmatprep.subr.mxu0 0.0
    %553 = vmatpush2.msra.mxu0 %v482
    %554 = vmatprep.subr.mxu0 0.0
    %555 = vmatpush2.msra.mxu0 %v481
    %556 = vmatprep.subr.mxu0 0.0
    %557 = vmatpush2.msra.mxu0 %v480
    %558 = vmatprep.subr.mxu0 0.0
    %559 = vmatpush2.msra.mxu0 %v479
    %560 = vmatprep.subr.mxu0 0.0
    %561 = vmatpush2.msra.mxu0 %v478
    %562 = vmatprep.subr.mxu0 0.0
    %563 = vmatpush2.msra.mxu0 %v477
    %564 = vmatprep.mubr.f32.mxu0 %v460
    %565 = vmatmul.mubr.f32.gmra.mxu0 %v459
    %v566 = vpop.f32.mrf.mxu0
    %v567 = vadd.f32 %v498, %v566
    %v568 = vpop.f32.mrf.mxu0
    %569 = vdwg.mxu0
    %v570 = vmax.f32 %v567, 0.0
    %v571 = vld [vmem:[%s7] sm:$0xff]
    %v572 = vld [vmem:[%s7 + $0x8] sm:$0xff]
    %v573 = vld [vmem:[%s7 + $0x10] sm:$0xff]
    %v574 = vld [vmem:[%s7 + $0x18] sm:$0xff]
    %v575 = vld [vmem:[%s7 + $0x20] sm:$0xff]
    %v576 = vld [vmem:[%s7 + $0x28] sm:$0xff]
    %v577 = vld [vmem:[%s7 + $0x30] sm:$0xff]
    %v578 = vld [vmem:[%s7 + $0x38] sm:$0xff]
    %v579 = vld [vmem:[%s7 + $0x40] sm:$0xff]
    %v580 = vld [vmem:[%s7 + $0x48] sm:$0xff]
    %v581 = vld [vmem:[%s7 + $0x50] sm:$0xff]
    %v582 = vld [vmem:[%s7 + $0x58] sm:$0xff]
    %v583 = vld [vmem:[%s7 + $0x60] sm:$0xff]
    %v584 = vld [vmem:[%s7 + $0x68] sm:$0xff]
    %v585 = vld [vmem:[%s7 + $0x70] sm:$0xff]
    %v586 = vld [vmem:[%s7 + $0x78] sm:$0xff]
    %v587 = vld [vmem:[%s8] sm:$0x1]
    %v589 = vlaneseq
    %v590 = vshrl.u32 %v589, 7
    %v591 = vsub.s32 0, %v590
    %v592 = vrot.slane %v587, %v591
    %594 = vmatprep.subr.mxu0 0.0
    %595 = vmatpush1.msra.mxu0 %v586
    %596 = vmatprep.subr.mxu0 0.0
    %597 = vmatpush1.msra.mxu0 %v585
    %598 = vmatprep.subr.mxu0 0.0
    %599 = vmatpush1.msra.mxu0 %v584
    %600 = vmatprep.subr.mxu0 0.0
    %601 = vmatpush1.msra.mxu0 %v583
    %602 = vmatprep.subr.mxu0 0.0
    %603 = vmatpush1.msra.mxu0 %v582
    %604 = vmatprep.subr.mxu0 0.0
    %605 = vmatpush1.msra.mxu0 %v581
    %606 = vmatprep.subr.mxu0 0.0
    %607 = vmatpush1.msra.mxu0 %v580
    %608 = vmatprep.subr.mxu0 0.0
    %609 = vmatpush1.msra.mxu0 %v579
    %610 = vmatprep.subr.mxu0 0.0
    %611 = vmatpush1.msra.mxu0 %v578
    %612 = vmatprep.subr.mxu0 0.0
    %613 = vmatpush1.msra.mxu0 %v577
    %614 = vmatprep.subr.mxu0 0.0
    %615 = vmatpush1.msra.mxu0 %v576
    %616 = vmatprep.subr.mxu0 0.0
    %617 = vmatpush1.msra.mxu0 %v575
    %618 = vmatprep.subr.mxu0 0.0
    %619 = vmatpush1.msra.mxu0 %v574
    %620 = vmatprep.subr.mxu0 0.0
    %621 = vmatpush1.msra.mxu0 %v573
    %622 = vmatprep.subr.mxu0 0.0
    %623 = vmatpush1.msra.mxu0 %v572
    %624 = vmatprep.subr.mxu0 0.0
    %625 = vmatpush1.msra.mxu0 %v571
    %626 = vmatprep.subr.mxu0 0.0
    %627 = vmatpush2.msra.mxu0 0.0
    %628 = vmatprep.subr.mxu0 0.0
    %629 = vmatpush2.msra.mxu0 0.0
    %630 = vmatprep.subr.mxu0 0.0
    %631 = vmatpush2.msra.mxu0 0.0
    %632 = vmatprep.subr.mxu0 0.0
    %633 = vmatpush2.msra.mxu0 0.0
    %634 = vmatprep.subr.mxu0 0.0
    %635 = vmatpush2.msra.mxu0 0.0
    %636 = vmatprep.subr.mxu0 0.0
    %637 = vmatpush2.msra.mxu0 0.0
    %638 = vmatprep.subr.mxu0 0.0
    %639 = vmatpush2.msra.mxu0 0.0
    %640 = vmatprep.subr.mxu0 0.0
    %641 = vmatpush2.msra.mxu0 0.0
    %642 = vmatprep.subr.mxu0 0.0
    %643 = vmatpush2.msra.mxu0 0.0
    %644 = vmatprep.subr.mxu0 0.0
    %645 = vmatpush2.msra.mxu0 0.0
    %646 = vmatprep.subr.mxu0 0.0
    %647 = vmatpush2.msra.mxu0 0.0
    %648 = vmatprep.subr.mxu0 0.0
    %649 = vmatpush2.msra.mxu0 0.0
    %650 = vmatprep.subr.mxu0 0.0
    %651 = vmatpush2.msra.mxu0 0.0
    %652 = vmatprep.subr.mxu0 0.0
    %653 = vmatpush2.msra.mxu0 0.0
    %654 = vmatprep.subr.mxu0 0.0
    %655 = vmatpush2.msra.mxu0 0.0
    %656 = vmatprep.subr.mxu0 0.0
    %657 = vmatpush2.msra.mxu0 0.0
    %658 = vmatprep.mubr.f32.mxu0 0.0
    %659 = vmatmul.mubr.f32.gmra.mxu0 %v570
    %v660 = vpop.f32.mrf.mxu0
    %v661 = vadd.f32 %v592, %v660
    %v662 = vpop.f32.mrf.mxu0
    %663 = vdwg.mxu0
    %664 = vst [vmem:[#allocation4] sm:$0x3] %v661
    // Predicated region
    $region38: #{cnn1d_forward.1} parent=1 // pred_check
      _
    $region39: #{cnn1d_forward.1} parent=1 // pred_check_branch
      %666 = sbr.rel (0) target = $region41
    $region40: #{cnn1d_forward.1} parent=1 // pred_region
      %s668 = ssub.s32 32, 32
      %669 = vsyncadd [#allocation5], %s668
      %s671 = sshll.u32 [#allocation4], 4
      %s672 = int_to_ptr.vmem [resolvable:$true] %s671
      %674 = dma.vmem_to_hbm [thread:$0]  %s672, 32, %s9, [#allocation5]
    $region41: #{cnn1d_forward.1} parent=1 // pred_fallthru
      _
    // Predicated region
    $region42: #{cnn1d_forward.1} parent=1 // pred_check
      _
    $region43: #{cnn1d_forward.1} parent=1 // pred_check_branch
      %676 = sbr.rel (0) target = $region45
    $region44: #{cnn1d_forward.1} parent=1 // pred_region
      %677 = dma.done [#allocation5], 32
    $region45: #{cnn1d_forward.1} parent=1 // pred_fallthru
      _
    %678 = vsyncpa [#allocation5], 1

</llo_original>
